<compile_context>
chip_gen: v5e
topology: v5e:2x2
jax: 0.10.0
libtpu: 0.0.40
codegen_flags: <defaults>
</compile_context>

<pallas_src>
import functools

import numpy as np

import jax
import jax.numpy as jnp
from jax.experimental import pallas as pl
from jax.experimental.pallas import tpu as pltpu


def _ddf_kernel(x_ref, wsp_ref, bsp_ref, mask_ref, w1t_ref, b1_ref, w2r_ref,
                b2r_ref, out_ref, *, H, W, C, K, MID, BBLK, compute_dtype):
    """One BBLK-sized batch block per grid step.

    x_ref    : (BBLK, C, H*W)  input slab, spatial dims fused into lanes
    wsp_ref  : (K*K, C)        1x1 conv weight of the spatial branch
    bsp_ref  : (K*K, 1)        1x1 conv bias
    mask_ref : (K*K, H*W)      1.0 where tap (dy, dx) lands inside the image
    w1t_ref  : (C, MID)        squeeze layer weight, transposed
    b1_ref   : (1, MID)        squeeze layer bias
    w2r_ref  : (MID, C, K*K)   excite layer weight, reshaped ([m,c,ki] order)
    b2r_ref  : (C, K*K)        excite layer bias, reshaped
    out_ref  : (BBLK, C, H*W)
    """
    KK = K * K
    HW = H * W

    # Weights / constants shared across the whole block: load (and cast) once.
    wsp = wsp_ref[...].astype(compute_dtype)            # (KK, C)
    bsp = bsp_ref[...]                                   # (KK, 1)  f32
    mask = mask_ref[...]                                 # (KK, HW) f32
    w1t = w1t_ref[...]                                   # (C, MID) f32
    b1 = b1_ref[...]                                     # (1, MID) f32
    b2r = b2r_ref[...]                                   # (C, KK)  f32
    w2r = [w2r_ref[m] for m in range(MID)]               # MID x (C, KK) f32

    for b in range(BBLK):                                # static unroll (BBLK small)
        xb = x_ref[b]                                    # (C, HW) f32
        xc = xb.astype(compute_dtype)                    # hot-loop copy (bf16 on v6e/v7x)

        # ---- spatial branch: 1x1 conv + sigmoid; unfold padding folded into mask
        logits = jnp.dot(wsp, xc, preferred_element_type=jnp.float32) + bsp
        sfilt = (jax.nn.sigmoid(logits) * mask).astype(compute_dtype)   # (KK, HW)

        # ---- channel branch (squeeze-excite), fused so x is read from HBM once
        gap = jnp.mean(xb, axis=1, keepdims=True)                       # (C, 1) f32
        h1 = jnp.sum(w1t * gap, axis=0, keepdims=True) + b1             # (1, MID)
        h1 = jnp.maximum(h1, 0.0)                                       # relu
        z = b2r
        for m in range(MID):                             # MID is tiny (e.g. 3)
            z = z + h1[0:1, m:m + 1] * w2r[m]            # (1,1) * (C,KK) broadcast
        ch = jax.nn.sigmoid(z).astype(compute_dtype)     # (C, KK)

        # ---- implicit unfold (lane rolls, XLU) + decoupled dynamic filtering (VPU)
        # Wrap-around taps were zeroed by `mask` folded into sfilt above.
        acc = jnp.zeros((C, HW), jnp.float32)
        for ki in range(KK):
            dy, dx = ki // K, ki % K
            off = (dy - K // 2) * W + (dx - K // 2)      # flattened tap offset (pad=1)
            patch = xc if off == 0 else pltpu.roll(xc, shift=(-off) % HW, axis=1)
            # combined weight: lane-dense sfilt row x lane-broadcast channel column
            wgt = sfilt[ki:ki + 1, :] * ch[:, ki:ki + 1]                 # (C, HW)
            # TODO(synk): if a bundle dump shows VALU binding after the bf16 switch,
            # pairwise-sum two taps' products before the f32 accumulate.
            acc = acc + (patch * wgt).astype(jnp.float32)
        out_ref[b] = acc.astype(out_ref.dtype)


def _unfold_pad_mask(h, w, k):
    """(k*k, h*w) f32 mask: 1 where tap (dy, dx) with pad=(k-1)//2 is in-bounds."""
    pad = (k - 1) // 2
    yy = np.arange(h)[:, None]
    xx = np.arange(w)[None, :]
    rows = []
    for dy in range(k):
        for dx in range(k):
            valid = ((yy + dy - pad >= 0) & (yy + dy - pad < h) &
                     (xx + dx - pad >= 0) & (xx + dx - pad < w))
            rows.append(valid.reshape(-1))
    return jnp.asarray(np.stack(rows).astype(np.float32))


def _tpu_generation_defaults():
    """Return (has_bf16_vpu, physical_vmem_bytes) for the current TPU."""
    kind = ""
    try:
        kind = jax.devices()[0].device_kind.lower()
    except Exception:
        pass
    # bf16 VALU/EUP exist on v6e (Trillium) and v7x; v5e and older are f32-only.
    has_bf16_vpu = any(tag in kind for tag in ("v6", "v7", "7x", "trillium"))
    vmem_phys = (64 * 1024 * 1024 if ("v7" in kind or "7x" in kind)
                 else 128 * 1024 * 1024)
    try:  # prefer the exact number when the query is available
        vmem_phys = int(pltpu.get_tpu_info().vmem_capacity_bytes)
    except Exception:
        pass
    return has_bf16_vpu, vmem_phys


def ddf_conv2d(x_nchw, params, kernel_size=3, compute_dtype=None, block_batch=None):
    """Forward pass of DDF_Conv2D.  x_nchw: (b, c, h, w) float32.

    compute_dtype=None picks bfloat16 for the k*k hot loop on chips with a bf16
    VPU (v6e / v7x) and float32 otherwise (v5e); pass jnp.float32 explicitly for
    a bit-faithful match of the PyTorch forward.  Accumulation is always f32.
    """
    k = kernel_size
    # The PyTorch module hard-codes nn.Unfold(padding=1); the roll offsets /
    # pad mask below implement the matching 3x3 "same" window.
    assert k == 3, "this Pallas kernel implements the module's k=3 / padding=1 path"
    kk = k * k
    b, c, h, w = x_nchw.shape
    hw = h * w

    w_sp, b_sp, w1, b1, w2, b2 = (
        params["w_sp"], params["b_sp"], params["w1"], params["b1"],
        params["w2"], params["b2"])
    mid = w1.shape[0]
    assert mid >= 1

    has_bf16_vpu, vmem_phys = _tpu_generation_defaults()
    if compute_dtype is None:
        compute_dtype = jnp.bfloat16 if has_bf16_vpu else jnp.float32

    # Scoped-VMEM limit derived from the chip's physical VMEM (64 MiB on v7x,
    # 128 MiB on v5e/v6e), with headroom for Mosaic's own scratch.
    vmem_limit = int(min(0.6 * vmem_phys, 100 * 1024 * 1024))

    # Batch elements per grid step: as many as comfortably fit (x + out slabs,
    # double buffered), while keeping >= 2 grid steps so both v7x TensorCores
    # get work, and dividing b evenly so there is no ragged last block.
    if block_batch is None:
        per_batch_bytes = 4 * c * hw * 4               # (in + out) x double-buffer, f32
        bb = max(1, min(b, (vmem_limit // 2) // max(per_batch_bytes, 1)))
        if b >= 2:
            bb = min(bb, max(1, b // 2))
        while b % bb:
            bb -= 1
        block_batch = bb
    assert b % block_batch == 0

    # Free reshape (no transpose, no jnp.pad): NCHW -> (b, c, h*w).
    x2d = x_nchw.reshape(b, c, hw)

    # Tiny host-side weight re-layouts (negligible).
    wsp_mat = w_sp.reshape(kk, c)                      # spatial 1x1 conv weight
    bsp_mat = b_sp.reshape(kk, 1)
    w1t = w1.T                                         # (c, mid)
    b1r = b1.reshape(1, mid)
    w2r = w2.reshape(c, kk, mid).transpose(2, 0, 1)    # (mid, c, kk); [m,c,ki]=w2[c*kk+ki,m]
    b2r = b2.reshape(c, kk)

    # Zero padding of the implicit unfold, folded into the spatial filter.
    mask = _unfold_pad_mask(h, w, k)                   # (kk, hw)

    kernel = functools.partial(_ddf_kernel, H=h, W=w, C=c, K=k, MID=mid,
                               BBLK=block_batch, compute_dtype=compute_dtype)

    cost = pl.CostEstimate(
        flops=int(b * (2 * kk * c * hw          # spatial 1x1 conv
                       + 3 * kk * c * hw        # k*k tap loop (2 mul + 1 add)
                       + 2 * c * hw             # global average pool
                       + 2 * c * mid + 2 * mid * c * kk)),   # SE layers
        transcendentals=int(b * (kk * hw + c * kk)),          # sigmoids
        bytes_accessed=int(2 * b * c * hw * 4 +
                           4 * (kk * c + kk + kk * hw + c * mid + mid
                                + mid * c * kk + c * kk)),
    )

    # TODO(synk): for production-size images where even a block_batch=1 slab
    # exceeds the VMEM budget, additionally tile H across the grid with a 1-row
    # halo (extend the mask to zero block-boundary taps) and compute the
    # whole-image gap for the channel filter in a tiny prepass.
    out2d = pl.pallas_call(
        kernel,
        out_shape=jax.ShapeDtypeStruct((b, c, hw), jnp.float32),
        grid=(b // block_batch,),
        in_specs=[
            pl.BlockSpec((block_batch, c, hw), lambda i: (i, 0, 0)),  # x slab
            pl.BlockSpec((kk, c), lambda i: (0, 0)),                  # spatial weight
            pl.BlockSpec((kk, 1), lambda i: (0, 0)),                  # spatial bias
            pl.BlockSpec((kk, hw), lambda i: (0, 0)),                 # pad mask
            pl.BlockSpec((c, mid), lambda i: (0, 0)),                 # SE w1^T
            pl.BlockSpec((1, mid), lambda i: (0, 0)),                 # SE b1
            pl.BlockSpec((mid, c, kk), lambda i: (0, 0, 0)),          # SE w2 (reshaped)
            pl.BlockSpec((c, kk), lambda i: (0, 0)),                  # SE b2 (reshaped)
        ],
        out_specs=pl.BlockSpec((block_batch, c, hw), lambda i: (i, 0, 0)),
        compiler_params=pltpu.CompilerParams(
            dimension_semantics=("parallel",),
            vmem_limit_bytes=vmem_limit),
        cost_estimate=cost,
    )(x2d, wsp_mat, bsp_mat, mask, w1t, b1r, w2r, b2r)

    return out2d.reshape(b, c, h, w)


def ddf_conv2d_reference(x, params, kernel_size=3):
    """Pure-JAX reference mirroring the PyTorch forward exactly."""
    k = kernel_size
    kk = k * k
    b, c, h, w = x.shape
    w_sp, b_sp, w1, b1, w2, b2 = (
        params["w_sp"], params["b_sp"], params["w1"], params["b1"],
        params["w2"], params["b2"])

    gap = jnp.mean(x, axis=(2, 3))
    h1 = jax.nn.relu(gap @ w1.T + b1)
    channel_filter = jax.nn.sigmoid(h1 @ w2.T + b2).reshape(b, c, kk, 1, 1)

    # spatial branch: 1x1 conv (NCHW) + sigmoid
    sp = jnp.einsum("bchw,oc->bohw", x, w_sp.reshape(kk, c)) + \
        b_sp.reshape(1, kk, 1, 1)
    spatial_filter = jax.nn.sigmoid(sp).reshape(b, 1, kk, h, w)

    # unfold(kernel=3, pad=1, stride=1)
    pad = (k - 1) // 2
    xp = jnp.pad(x, ((0, 0), (0, 0), (pad, pad), (pad, pad)))
    patches = jnp.stack(
        [xp[:, :, dy:dy + h, dx:dx + w] for dy in range(k) for dx in range(k)],
        axis=2)                                              # (b, c, k*k, h, w)

    return (patches * (spatial_filter * channel_filter)).sum(2)


def init_params(key, in_channels, kernel_size=3, se_ratio=0.2):
    c = in_channels
    kk = kernel_size * kernel_size
    mid = int(c * se_ratio)
    assert mid >= 1, "pick in_channels so that int(c*se_ratio) >= 1"
    keys = jax.random.split(key, 6)
    scale = 0.1
    return {
        # spatial_branch: Conv2d(c, k*k, 1)
        "w_sp": scale * jax.random.normal(keys[0], (kk, c, 1, 1), jnp.float32),
        "b_sp": scale * jax.random.normal(keys[1], (kk,), jnp.float32),
        # channel_branch: Conv2d(c, mid, 1), Conv2d(mid, c*k*k, 1)
        "w1": scale * jax.random.normal(keys[2], (mid, c), jnp.float32),
        "b1": scale * jax.random.normal(keys[3], (mid,), jnp.float32),
        "w2": scale * jax.random.normal(keys[4], (c * kk, mid), jnp.float32),
        "b2": scale * jax.random.normal(keys[5], (c * kk,), jnp.float32),
    }


if __name__ == "__main__":
    # in_channels=16 -> mid_channels = int(16*0.2) = 3 (module needs mid >= 1)
    B, C, H, W = 2, 16, 16, 16
    K = 3

    key = jax.random.PRNGKey(0)
    k_x, k_p = jax.random.split(key)
    x = jax.random.normal(k_x, (B, C, H, W), jnp.float32)
    params = init_params(k_p, C, kernel_size=K)

    ref = ddf_conv2d_reference(x, params, kernel_size=K)

    # Exact path (f32 hot loop): tight tolerance vs the reference.
    out_f32 = jax.block_until_ready(
        ddf_conv2d(x, params, kernel_size=K, compute_dtype=jnp.float32))
    assert out_f32.shape == (B, C, H, W)
    assert jnp.allclose(out_f32, ref, atol=1e-4, rtol=1e-4), "f32 mismatch vs reference"

    # Generation-tuned default path (bf16 hot loop on v6e/v7x, f32 on v5e):
    # looser tolerance for the bf16 multiplies (accumulation stays f32).
    out_def = jax.block_until_ready(ddf_conv2d(x, params, kernel_size=K))
    assert out_def.shape == (B, C, H, W)
    assert jnp.allclose(out_def, ref, atol=5e-2, rtol=5e-2), "default-path mismatch vs reference"

    print("KERNEL_OK")
</pallas_src>

<mosaic_0001>
module attributes {stable_mosaic.version = 11 : i64} {
  func.func @_ddf_kernel(%arg0: i32, %arg1: memref<1x16x256xf32, #tpu.memory_space<vmem>>, %arg2: memref<9x16xf32, #tpu.memory_space<vmem>>, %arg3: memref<9x1xf32, #tpu.memory_space<vmem>>, %arg4: memref<9x256xf32, #tpu.memory_space<vmem>>, %arg5: memref<16x3xf32, #tpu.memory_space<vmem>>, %arg6: memref<1x3xf32, #tpu.memory_space<vmem>>, %arg7: memref<3x16x9xf32, #tpu.memory_space<vmem>>, %arg8: memref<16x9xf32, #tpu.memory_space<vmem>>, %arg9: memref<1x16x256xf32, #tpu.memory_space<vmem>>) attributes {dimension_semantics = [#tpu.dimension_semantics<parallel>], iteration_bounds = array<i64: 2>, scalar_prefetch = 0 : i64, scratch_operands = 0 : i64, tpu.core_type = #tpu.core_type<tc>, window_params = [{transform_indices = @transform_0, window_bounds = array<i64: 1, 16, 256>}, {pipeline_mode = #tpu.pipeline_mode<synchronous>, transform_indices = @transform_1, window_bounds = array<i64: 9, 16>}, {pipeline_mode = #tpu.pipeline_mode<synchronous>, transform_indices = @transform_2, window_bounds = array<i64: 9, 1>}, {pipeline_mode = #tpu.pipeline_mode<synchronous>, transform_indices = @transform_3, window_bounds = array<i64: 9, 256>}, {pipeline_mode = #tpu.pipeline_mode<synchronous>, transform_indices = @transform_4, window_bounds = array<i64: 16, 3>}, {pipeline_mode = #tpu.pipeline_mode<synchronous>, transform_indices = @transform_5, window_bounds = array<i64: 1, 3>}, {pipeline_mode = #tpu.pipeline_mode<synchronous>, transform_indices = @transform_6, window_bounds = array<i64: 3, 16, 9>}, {pipeline_mode = #tpu.pipeline_mode<synchronous>, transform_indices = @transform_7, window_bounds = array<i64: 16, 9>}, {transform_indices = @transform_8, window_bounds = array<i64: 1, 16, 256>}]} {
    %c0 = arith.constant 0 : index
    %c0_0 = arith.constant 0 : index
    %0 = vector.load %arg2[%c0, %c0_0] : memref<9x16xf32, #tpu.memory_space<vmem>>, vector<9x16xf32>
    %c0_1 = arith.constant 0 : index
    %c0_2 = arith.constant 0 : index
    %1 = vector.load %arg3[%c0_1, %c0_2] : memref<9x1xf32, #tpu.memory_space<vmem>>, vector<9x1xf32>
    %c0_3 = arith.constant 0 : index
    %c0_4 = arith.constant 0 : index
    %2 = vector.load %arg4[%c0_3, %c0_4] : memref<9x256xf32, #tpu.memory_space<vmem>>, vector<9x256xf32>
    %c0_5 = arith.constant 0 : index
    %c0_6 = arith.constant 0 : index
    %3 = vector.load %arg5[%c0_5, %c0_6] : memref<16x3xf32, #tpu.memory_space<vmem>>, vector<16x3xf32>
    %c0_7 = arith.constant 0 : index
    %c0_8 = arith.constant 0 : index
    %4 = vector.load %arg6[%c0_7, %c0_8] : memref<1x3xf32, #tpu.memory_space<vmem>>, vector<1x3xf32>
    %c0_9 = arith.constant 0 : index
    %c0_10 = arith.constant 0 : index
    %5 = vector.load %arg8[%c0_9, %c0_10] : memref<16x9xf32, #tpu.memory_space<vmem>>, vector<16x9xf32>
    %c0_11 = arith.constant 0 : index
    %c0_12 = arith.constant 0 : index
    %c0_13 = arith.constant 0 : index
    %6 = vector.load %arg7[%c0_11, %c0_12, %c0_13] : memref<3x16x9xf32, #tpu.memory_space<vmem>>, vector<1x16x9xf32>
    %7 = vector.shape_cast %6 : vector<1x16x9xf32> to vector<16x9xf32>
    %c1 = arith.constant 1 : index
    %c0_14 = arith.constant 0 : index
    %c0_15 = arith.constant 0 : index
    %8 = vector.load %arg7[%c1, %c0_14, %c0_15] : memref<3x16x9xf32, #tpu.memory_space<vmem>>, vector<1x16x9xf32>
    %9 = vector.shape_cast %8 : vector<1x16x9xf32> to vector<16x9xf32>
    %c2 = arith.constant 2 : index
    %c0_16 = arith.constant 0 : index
    %c0_17 = arith.constant 0 : index
    %10 = vector.load %arg7[%c2, %c0_16, %c0_17] : memref<3x16x9xf32, #tpu.memory_space<vmem>>, vector<1x16x9xf32>
    %11 = vector.shape_cast %10 : vector<1x16x9xf32> to vector<16x9xf32>
    %c0_18 = arith.constant 0 : index
    %c0_19 = arith.constant 0 : index
    %c0_20 = arith.constant 0 : index
    %12 = vector.load %arg1[%c0_18, %c0_19, %c0_20] : memref<1x16x256xf32, #tpu.memory_space<vmem>>, vector<1x16x256xf32>
    %13 = vector.shape_cast %12 : vector<1x16x256xf32> to vector<16x256xf32>
    %cst = arith.constant dense<0.000000e+00> : vector<9x256xf32>
    %14 = tpu.matmul %0, %13, %cst {dimension_numbers = #tpu.dot_dimension_numbers<[1], [0], [0], [1], [0, 0, 1, 1], [], []>} : vector<9x16xf32>, vector<16x256xf32>, vector<9x256xf32> -> vector<9x256xf32>
    %15 = vector.broadcast %1 : vector<9x1xf32> to vector<9x256xf32>
    %16 = arith.addf %14, %15 : vector<9x256xf32>
    %17 = arith.negf %16 : vector<9x256xf32>
    %18 = math.exp %17 : vector<9x256xf32>
    %cst_21 = arith.constant 1.000000e+00 : f32
    %19 = vector.broadcast %cst_21 : f32 to vector<9x256xf32>
    %20 = arith.addf %19, %18 : vector<9x256xf32>
    %21 = arith.divf %19, %20 : vector<9x256xf32>
    %22 = arith.mulf %21, %2 : vector<9x256xf32>
    %cst_22 = arith.constant dense<0.000000e+00> : vector<16xf32>
    %23 = vector.multi_reduction <add>, %13, %cst_22 [1] : vector<16x256xf32> to vector<16xf32>
    %24 = vector.shape_cast %23 : vector<16xf32> to vector<16x1xf32>
    %cst_23 = arith.constant 2.560000e+02 : f32
    %25 = vector.broadcast %cst_23 : f32 to vector<16x1xf32>
    %26 = arith.divf %24, %25 : vector<16x1xf32>
    %27 = vector.broadcast %26 : vector<16x1xf32> to vector<16x3xf32>
    %28 = arith.mulf %3, %27 : vector<16x3xf32>
    %cst_24 = arith.constant dense<0.000000e+00> : vector<3xf32>
    %29 = vector.multi_reduction <add>, %28, %cst_24 [0] : vector<16x3xf32> to vector<3xf32>
    %30 = vector.shape_cast %29 : vector<3xf32> to vector<1x3xf32>
    %31 = arith.addf %30, %4 : vector<1x3xf32>
    %cst_25 = arith.constant 0.000000e+00 : f32
    %32 = vector.broadcast %cst_25 : f32 to vector<1x3xf32>
    %33 = arith.maximumf %31, %32 : vector<1x3xf32>
    %34 = vector.extract_strided_slice %33 {offsets = [0, 0], sizes = [1, 1], strides = [1, 1]} : vector<1x3xf32> to vector<1x1xf32>
    %35 = vector.broadcast %34 : vector<1x1xf32> to vector<16x9xf32>
    %36 = arith.mulf %35, %7 : vector<16x9xf32>
    %37 = arith.addf %5, %36 : vector<16x9xf32>
    %38 = vector.extract_strided_slice %33 {offsets = [0, 1], sizes = [1, 1], strides = [1, 1]} : vector<1x3xf32> to vector<1x1xf32>
    %39 = vector.broadcast %38 : vector<1x1xf32> to vector<16x9xf32>
    %40 = arith.mulf %39, %9 : vector<16x9xf32>
    %41 = arith.addf %37, %40 : vector<16x9xf32>
    %42 = vector.extract_strided_slice %33 {offsets = [0, 2], sizes = [1, 1], strides = [1, 1]} : vector<1x3xf32> to vector<1x1xf32>
    %43 = vector.broadcast %42 : vector<1x1xf32> to vector<16x9xf32>
    %44 = arith.mulf %43, %11 : vector<16x9xf32>
    %45 = arith.addf %41, %44 : vector<16x9xf32>
    %46 = arith.negf %45 : vector<16x9xf32>
    %47 = math.exp %46 : vector<16x9xf32>
    %cst_26 = arith.constant 1.000000e+00 : f32
    %48 = vector.broadcast %cst_26 : f32 to vector<16x9xf32>
    %49 = arith.addf %48, %47 : vector<16x9xf32>
    %50 = arith.divf %48, %49 : vector<16x9xf32>
    %cst_27 = arith.constant 0.000000e+00 : f32
    %51 = vector.broadcast %cst_27 : f32 to vector<16x256xf32>
    %c17_i32 = arith.constant 17 : i32
    %52 = tpu.dynamic_rotate %13 by %c17_i32 dim 1 : vector<16x256xf32>, i32 -> vector<16x256xf32>
    %53 = vector.extract_strided_slice %22 {offsets = [0, 0], sizes = [1, 256], strides = [1, 1]} : vector<9x256xf32> to vector<1x256xf32>
    %54 = vector.extract_strided_slice %50 {offsets = [0, 0], sizes = [16, 1], strides = [1, 1]} : vector<16x9xf32> to vector<16x1xf32>
    %55 = vector.broadcast %53 : vector<1x256xf32> to vector<16x256xf32>
    %56 = vector.broadcast %54 : vector<16x1xf32> to vector<16x256xf32>
    %57 = arith.mulf %55, %56 : vector<16x256xf32>
    %58 = arith.mulf %52, %57 : vector<16x256xf32>
    %59 = arith.addf %51, %58 : vector<16x256xf32>
    %c16_i32 = arith.constant 16 : i32
    %60 = tpu.dynamic_rotate %13 by %c16_i32 dim 1 : vector<16x256xf32>, i32 -> vector<16x256xf32>
    %61 = vector.extract_strided_slice %22 {offsets = [1, 0], sizes = [1, 256], strides = [1, 1]} : vector<9x256xf32> to vector<1x256xf32>
    %62 = vector.extract_strided_slice %50 {offsets = [0, 1], sizes = [16, 1], strides = [1, 1]} : vector<16x9xf32> to vector<16x1xf32>
    %63 = vector.broadcast %61 : vector<1x256xf32> to vector<16x256xf32>
    %64 = vector.broadcast %62 : vector<16x1xf32> to vector<16x256xf32>
    %65 = arith.mulf %63, %64 : vector<16x256xf32>
    %66 = arith.mulf %60, %65 : vector<16x256xf32>
    %67 = arith.addf %59, %66 : vector<16x256xf32>
    %c15_i32 = arith.constant 15 : i32
    %68 = tpu.dynamic_rotate %13 by %c15_i32 dim 1 : vector<16x256xf32>, i32 -> vector<16x256xf32>
    %69 = vector.extract_strided_slice %22 {offsets = [2, 0], sizes = [1, 256], strides = [1, 1]} : vector<9x256xf32> to vector<1x256xf32>
    %70 = vector.extract_strided_slice %50 {offsets = [0, 2], sizes = [16, 1], strides = [1, 1]} : vector<16x9xf32> to vector<16x1xf32>
    %71 = vector.broadcast %69 : vector<1x256xf32> to vector<16x256xf32>
    %72 = vector.broadcast %70 : vector<16x1xf32> to vector<16x256xf32>
    %73 = arith.mulf %71, %72 : vector<16x256xf32>
    %74 = arith.mulf %68, %73 : vector<16x256xf32>
    %75 = arith.addf %67, %74 : vector<16x256xf32>
    %c1_i32 = arith.constant 1 : i32
    %76 = tpu.dynamic_rotate %13 by %c1_i32 dim 1 : vector<16x256xf32>, i32 -> vector<16x256xf32>
    %77 = vector.extract_strided_slice %22 {offsets = [3, 0], sizes = [1, 256], strides = [1, 1]} : vector<9x256xf32> to vector<1x256xf32>
    %78 = vector.extract_strided_slice %50 {offsets = [0, 3], sizes = [16, 1], strides = [1, 1]} : vector<16x9xf32> to vector<16x1xf32>
    %79 = vector.broadcast %77 : vector<1x256xf32> to vector<16x256xf32>
    %80 = vector.broadcast %78 : vector<16x1xf32> to vector<16x256xf32>
    %81 = arith.mulf %79, %80 : vector<16x256xf32>
    %82 = arith.mulf %76, %81 : vector<16x256xf32>
    %83 = arith.addf %75, %82 : vector<16x256xf32>
    %84 = vector.extract_strided_slice %22 {offsets = [4, 0], sizes = [1, 256], strides = [1, 1]} : vector<9x256xf32> to vector<1x256xf32>
    %85 = vector.extract_strided_slice %50 {offsets = [0, 4], sizes = [16, 1], strides = [1, 1]} : vector<16x9xf32> to vector<16x1xf32>
    %86 = vector.broadcast %84 : vector<1x256xf32> to vector<16x256xf32>
    %87 = vector.broadcast %85 : vector<16x1xf32> to vector<16x256xf32>
    %88 = arith.mulf %86, %87 : vector<16x256xf32>
    %89 = arith.mulf %13, %88 : vector<16x256xf32>
    %90 = arith.addf %83, %89 : vector<16x256xf32>
    %c255_i32 = arith.constant 255 : i32
    %91 = tpu.dynamic_rotate %13 by %c255_i32 dim 1 : vector<16x256xf32>, i32 -> vector<16x256xf32>
    %92 = vector.extract_strided_slice %22 {offsets = [5, 0], sizes = [1, 256], strides = [1, 1]} : vector<9x256xf32> to vector<1x256xf32>
    %93 = vector.extract_strided_slice %50 {offsets = [0, 5], sizes = [16, 1], strides = [1, 1]} : vector<16x9xf32> to vector<16x1xf32>
    %94 = vector.broadcast %92 : vector<1x256xf32> to vector<16x256xf32>
    %95 = vector.broadcast %93 : vector<16x1xf32> to vector<16x256xf32>
    %96 = arith.mulf %94, %95 : vector<16x256xf32>
    %97 = arith.mulf %91, %96 : vector<16x256xf32>
    %98 = arith.addf %90, %97 : vector<16x256xf32>
    %c241_i32 = arith.constant 241 : i32
    %99 = tpu.dynamic_rotate %13 by %c241_i32 dim 1 : vector<16x256xf32>, i32 -> vector<16x256xf32>
    %100 = vector.extract_strided_slice %22 {offsets = [6, 0], sizes = [1, 256], strides = [1, 1]} : vector<9x256xf32> to vector<1x256xf32>
    %101 = vector.extract_strided_slice %50 {offsets = [0, 6], sizes = [16, 1], strides = [1, 1]} : vector<16x9xf32> to vector<16x1xf32>
    %102 = vector.broadcast %100 : vector<1x256xf32> to vector<16x256xf32>
    %103 = vector.broadcast %101 : vector<16x1xf32> to vector<16x256xf32>
    %104 = arith.mulf %102, %103 : vector<16x256xf32>
    %105 = arith.mulf %99, %104 : vector<16x256xf32>
    %106 = arith.addf %98, %105 : vector<16x256xf32>
    %c240_i32 = arith.constant 240 : i32
    %107 = tpu.dynamic_rotate %13 by %c240_i32 dim 1 : vector<16x256xf32>, i32 -> vector<16x256xf32>
    %108 = vector.extract_strided_slice %22 {offsets = [7, 0], sizes = [1, 256], strides = [1, 1]} : vector<9x256xf32> to vector<1x256xf32>
    %109 = vector.extract_strided_slice %50 {offsets = [0, 7], sizes = [16, 1], strides = [1, 1]} : vector<16x9xf32> to vector<16x1xf32>
    %110 = vector.broadcast %108 : vector<1x256xf32> to vector<16x256xf32>
    %111 = vector.broadcast %109 : vector<16x1xf32> to vector<16x256xf32>
    %112 = arith.mulf %110, %111 : vector<16x256xf32>
    %113 = arith.mulf %107, %112 : vector<16x256xf32>
    %114 = arith.addf %106, %113 : vector<16x256xf32>
    %c239_i32 = arith.constant 239 : i32
    %115 = tpu.dynamic_rotate %13 by %c239_i32 dim 1 : vector<16x256xf32>, i32 -> vector<16x256xf32>
    %116 = vector.extract_strided_slice %22 {offsets = [8, 0], sizes = [1, 256], strides = [1, 1]} : vector<9x256xf32> to vector<1x256xf32>
    %117 = vector.extract_strided_slice %50 {offsets = [0, 8], sizes = [16, 1], strides = [1, 1]} : vector<16x9xf32> to vector<16x1xf32>
    %118 = vector.broadcast %116 : vector<1x256xf32> to vector<16x256xf32>
    %119 = vector.broadcast %117 : vector<16x1xf32> to vector<16x256xf32>
    %120 = arith.mulf %118, %119 : vector<16x256xf32>
    %121 = arith.mulf %115, %120 : vector<16x256xf32>
    %122 = arith.addf %114, %121 : vector<16x256xf32>
    %c0_28 = arith.constant 0 : index
    %c0_29 = arith.constant 0 : index
    %c0_30 = arith.constant 0 : index
    %123 = vector.load %arg9[%c0_28, %c0_29, %c0_30] : memref<1x16x256xf32, #tpu.memory_space<vmem>>, vector<1x16x256xf32>
    %124 = vector.shape_cast %123 : vector<1x16x256xf32> to vector<16x256xf32>
    %125 = vector.shape_cast %122 : vector<16x256xf32> to vector<1x16x256xf32>
    tpu.vector_store %arg9[%c0_28, %c0_29, %c0_30], %125 {strides = array<i32>} : memref<1x16x256xf32, #tpu.memory_space<vmem>>, vector<1x16x256xf32>,
    return
  }
  func.func @transform_0(%arg0: i32) -> (i32, i32, i32) {
    %c0_i32 = arith.constant 0 : i32
    %c0_i32_0 = arith.constant 0 : i32
    %c0_i32_1 = arith.constant 0 : i32
    return %arg0, %c0_i32, %c0_i32_0 : i32, i32, i32
  }
  func.func @transform_1(%arg0: i32) -> (i32, i32) {
    %c0_i32 = arith.constant 0 : i32
    %c0_i32_0 = arith.constant 0 : i32
    %c0_i32_1 = arith.constant 0 : i32
    return %c0_i32, %c0_i32_0 : i32, i32
  }
  func.func @transform_2(%arg0: i32) -> (i32, i32) {
    %c0_i32 = arith.constant 0 : i32
    %c0_i32_0 = arith.constant 0 : i32
    %c0_i32_1 = arith.constant 0 : i32
    return %c0_i32, %c0_i32_0 : i32, i32
  }
  func.func @transform_3(%arg0: i32) -> (i32, i32) {
    %c0_i32 = arith.constant 0 : i32
    %c0_i32_0 = arith.constant 0 : i32
    %c0_i32_1 = arith.constant 0 : i32
    return %c0_i32, %c0_i32_0 : i32, i32
  }
  func.func @transform_4(%arg0: i32) -> (i32, i32) {
    %c0_i32 = arith.constant 0 : i32
    %c0_i32_0 = arith.constant 0 : i32
    %c0_i32_1 = arith.constant 0 : i32
    return %c0_i32, %c0_i32_0 : i32, i32
  }
  func.func @transform_5(%arg0: i32) -> (i32, i32) {
    %c0_i32 = arith.constant 0 : i32
    %c0_i32_0 = arith.constant 0 : i32
    %c0_i32_1 = arith.constant 0 : i32
    return %c0_i32, %c0_i32_0 : i32, i32
  }
  func.func @transform_6(%arg0: i32) -> (i32, i32, i32) {
    %c0_i32 = arith.constant 0 : i32
    %c0_i32_0 = arith.constant 0 : i32
    %c0_i32_1 = arith.constant 0 : i32
    %c0_i32_2 = arith.constant 0 : i32
    return %c0_i32, %c0_i32_0, %c0_i32_1 : i32, i32, i32
  }
  func.func @transform_7(%arg0: i32) -> (i32, i32) {
    %c0_i32 = arith.constant 0 : i32
    %c0_i32_0 = arith.constant 0 : i32
    %c0_i32_1 = arith.constant 0 : i32
    return %c0_i32, %c0_i32_0 : i32, i32
  }
  func.func @transform_8(%arg0: i32) -> (i32, i32, i32) {
    %c0_i32 = arith.constant 0 : i32
    %c0_i32_0 = arith.constant 0 : i32
    %c0_i32_1 = arith.constant 0 : i32
    return %arg0, %c0_i32, %c0_i32_0 : i32, i32, i32
  }
}

</mosaic_0001>

<llo_original>
// kernel: tpu_custom_call.1
$region0: #{tpu_custom_call.1}
  #allocation0 [shape = 'u32[]', space=smem, size = 0x4, offset = 0x4, fixed_abs, tag = 'smem constant byte address 0x4 - core index']
  #allocation1 [shape = 'u32[72,128]{1,0:T(1,128)}', space=vmem, size = 0x9000, scoped, tag = 'internal scratch']
  %s0 = inlined_call_operand.vmem [shape: f32[2,16,256], index: 0, kind: input, shape index: {}]
  %s1 = inlined_call_operand.vmem [shape: f32[9,16], index: 1, kind: input, shape index: {}]
  %s2 = inlined_call_operand.vmem [shape: f32[9,1], index: 2, kind: input, shape index: {}]
  %s3 = inlined_call_operand.hbm [shape: f32[9,256], index: 3, kind: input, shape index: {}]
  %s4 = inlined_call_operand.vmem [shape: f32[16,3], index: 4, kind: input, shape index: {}]
  %s5 = inlined_call_operand.vmem [shape: f32[1,3], index: 5, kind: input, shape index: {}]
  %s6 = inlined_call_operand.vmem [shape: f32[3,16,9], index: 6, kind: input, shape index: {}]
  %s7 = inlined_call_operand.hbm [shape: f32[16,9], index: 7, kind: input, shape index: {}]
  %s8 = inlined_call_operand.hbm [shape: f32[2,16,256], index: 8, kind: output, shape index: {}]
  %s9 = sld [smem:[#allocation0]]
  $region73: #{tpu_custom_call.1} parent=0
    _
  %s11 = ssub.s32 1, %s9
  %s12 = scalar_select 0, %s11, %s9
  $region1: #{tpu_custom_call.1} parent=0
    #allocation2 [shape = 'u8[16384]{0}', space=vmem, size = 0x4000, scoped, tag = 'input window, operand 3, single buffered']
    #allocation3 [shape = 's32[2]{0}', space=sflag, size = 0x8, scoped, tag = 'scoped memory for tpu_custom_call.1']
    #allocation4 [shape = 's32[2]{0}', space=sflag, size = 0x8, scoped, tag = 'scoped memory for tpu_custom_call.1']
    #allocation5 [shape = 'u8[8192]{0}', space=vmem, size = 0x2000, scoped, tag = 'input window, operand 7, single buffered']
    #allocation6 [shape = 's32[1]{0}', space=sflag, size = 0x4, scoped, tag = 'scoped memory for tpu_custom_call.1']
    #allocation7 [shape = 'u8[32768]{0}', space=vmem, size = 0x8000, scoped, tag = 'output window, operand 0']
    %13 = vsyncpa [#allocation3], 0
    %14 = vsyncpa [#allocation6], 0
    %15 = vsyncpa [#allocation4], 0
    %s16 = scalar_lea.sflag [#allocation4], 1
    %17 = vsyncpa %s16, 0
    loop: start=0, step=1, limit=4
    $region2: #{tpu_custom_call.1} parent=1 // loop_pre_header
      _
    $region3: #{tpu_custom_call.1} parent=1 // loop_header
      %s19 = sphi 0, %s23
      %p20 = scmp.ge.s32.totalorder %s19, 4
      %s29 = sphi 0, %s31
      %s32 = sphi 0, %s29
      %s33 = sphi 0, %s32
      %s49 = sphi 0, %s33
      %s53 = sphi 0, %s53
      %s55 = sphi 0, %s53
      %s56 = sphi 0, %s55
      %s70 = sphi 0, %s56
      %s74 = sphi 0, %s74
      %s76 = sphi 0, %s74
      %s77 = sphi 0, %s76
      %s91 = sphi 0, %s77
      %s95 = sphi 0, %s95
      %s97 = sphi 0, %s95
      %s98 = sphi 0, %s97
      %s112 = sphi 0, %s98
      %s116 = sphi 0, %s116
      %s118 = sphi 0, %s116
      %s119 = sphi 0, %s118
      %s133 = sphi 0, %s119
      %s137 = sphi 0, %s137
      %s139 = sphi 0, %s137
      %s140 = sphi 0, %s139
      %s154 = sphi 0, %s140
      %s158 = sphi 0, %s158
      %s160 = sphi 0, %s158
      %s161 = sphi 0, %s160
      %s175 = sphi 0, %s161
      %s179 = sphi 0, %s179
      %s181 = sphi 0, %s179
      %s182 = sphi 0, %s181
      %s196 = sphi 0, %s182
      %s202 = sphi 0, %s204
      %s205 = sphi 0, %s202
      %s206 = sphi 0, %s205
      %s222 = sphi 0, %s206
    $region4: #{tpu_custom_call.1} parent=1 // loop_header_branch
      %22 = sbr.rel (%p20) target = $region8
    $region5: #{tpu_custom_call.1} parent=1 // loop_body
      %s24 = ssub.s32 %s19, 1
      %s25 = ssub.s32 %s19, 2
      %s26 = sadd.s32 %s19, 1
      %s27 = ssub.s32 %s19, %s26
      %p28 = scmp.eq.s32.totalorder %s27, 0
      %s30 = sadd.s32 %s29, 1
      %s31 = scalar_select %p28, %s29, %s30
      %p34 = pneg %p28
      %p35 = scmp.eq.s32.totalorder %s19, 1
      %p36 = por %p34, %p35
      %p37 = scmp.ne.s32.totalorder %s29, %s32
      %p38 = scmp.eq.s32.totalorder %s19, 0
      %p39 = por %p37, %p38
      %p40 = scmp.ne.s32.totalorder %s29, %s32
      %p41 = scmp.eq.s32.totalorder %s24, 1
      %p42 = por %p40, %p41
      %p43 = scmp.ne.s32.totalorder %s32, %s33
      %p44 = scmp.eq.s32.totalorder %s24, 0
      %p45 = por %p43, %p44
      %p46 = scmp.ne.s32.totalorder %s32, %s33
      %p47 = scmp.eq.s32.totalorder %s25, 1
      %p48 = por %p46, %p47
      %p50 = scmp.ne.s32.totalorder %s33, %s49
      %p51 = scmp.eq.s32.totalorder %s25, 0
      %p52 = por %p50, %p51
      %s54 = sadd.s32 %s53, 1
      %p57 = scmp.eq.s32.totalorder %s19, 1
      %p58 = scmp.ne.s32.totalorder %s53, %s55
      %p59 = scmp.eq.s32.totalorder %s19, 0
      %p60 = por %p58, %p59
      %p61 = scmp.ne.s32.totalorder %s53, %s55
      %p62 = scmp.eq.s32.totalorder %s24, 1
      %p63 = por %p61, %p62
      %p64 = scmp.ne.s32.totalorder %s55, %s56
      %p65 = scmp.eq.s32.totalorder %s24, 0
      %p66 = por %p64, %p65
      %p67 = scmp.ne.s32.totalorder %s55, %s56
      %p68 = scmp.eq.s32.totalorder %s25, 1
      %p69 = por %p67, %p68
      %p71 = scmp.ne.s32.totalorder %s56, %s70
      %p72 = scmp.eq.s32.totalorder %s25, 0
      %p73 = por %p71, %p72
      %s75 = sadd.s32 %s74, 1
      %p78 = scmp.eq.s32.totalorder %s19, 1
      %p79 = scmp.ne.s32.totalorder %s74, %s76
      %p80 = scmp.eq.s32.totalorder %s19, 0
      %p81 = por %p79, %p80
      %p82 = scmp.ne.s32.totalorder %s74, %s76
      %p83 = scmp.eq.s32.totalorder %s24, 1
      %p84 = por %p82, %p83
      %p85 = scmp.ne.s32.totalorder %s76, %s77
      %p86 = scmp.eq.s32.totalorder %s24, 0
      %p87 = por %p85, %p86
      %p88 = scmp.ne.s32.totalorder %s76, %s77
      %p89 = scmp.eq.s32.totalorder %s25, 1
      %p90 = por %p88, %p89
      %p92 = scmp.ne.s32.totalorder %s77, %s91
      %p93 = scmp.eq.s32.totalorder %s25, 0
      %p94 = por %p92, %p93
      %s96 = sadd.s32 %s95, 1
      %p99 = scmp.eq.s32.totalorder %s19, 1
      %p100 = scmp.ne.s32.totalorder %s95, %s97
      %p101 = scmp.eq.s32.totalorder %s19, 0
      %p102 = por %p100, %p101
      %p103 = scmp.ne.s32.totalorder %s95, %s97
      %p104 = scmp.eq.s32.totalorder %s24, 1
      %p105 = por %p103, %p104
      %p106 = scmp.ne.s32.totalorder %s97, %s98
      %p107 = scmp.eq.s32.totalorder %s24, 0
      %p108 = por %p106, %p107
      %p109 = scmp.ne.s32.totalorder %s97, %s98
      %p110 = scmp.eq.s32.totalorder %s25, 1
      %p111 = por %p109, %p110
      %p113 = scmp.ne.s32.totalorder %s98, %s112
      %p114 = scmp.eq.s32.totalorder %s25, 0
      %p115 = por %p113, %p114
      %s117 = sadd.s32 %s116, 1
      %p120 = scmp.eq.s32.totalorder %s19, 1
      %p121 = scmp.ne.s32.totalorder %s116, %s118
      %p122 = scmp.eq.s32.totalorder %s19, 0
      %p123 = por %p121, %p122
      %p124 = scmp.ne.s32.totalorder %s116, %s118
      %p125 = scmp.eq.s32.totalorder %s24, 1
      %p126 = por %p124, %p125
      %p127 = scmp.ne.s32.totalorder %s118, %s119
      %p128 = scmp.eq.s32.totalorder %s24, 0
      %p129 = por %p127, %p128
      %p130 = scmp.ne.s32.totalorder %s118, %s119
      %p131 = scmp.eq.s32.totalorder %s25, 1
      %p132 = por %p130, %p131
      %p134 = scmp.ne.s32.totalorder %s119, %s133
      %p135 = scmp.eq.s32.totalorder %s25, 0
      %p136 = por %p134, %p135
      %s138 = sadd.s32 %s137, 1
      %p141 = scmp.eq.s32.totalorder %s19, 1
      %p142 = scmp.ne.s32.totalorder %s137, %s139
      %p143 = scmp.eq.s32.totalorder %s19, 0
      %p144 = por %p142, %p143
      %p145 = scmp.ne.s32.totalorder %s137, %s139
      %p146 = scmp.eq.s32.totalorder %s24, 1
      %p147 = por %p145, %p146
      %p148 = scmp.ne.s32.totalorder %s139, %s140
      %p149 = scmp.eq.s32.totalorder %s24, 0
      %p150 = por %p148, %p149
      %p151 = scmp.ne.s32.totalorder %s139, %s140
      %p152 = scmp.eq.s32.totalorder %s25, 1
      %p153 = por %p151, %p152
      %p155 = scmp.ne.s32.totalorder %s140, %s154
      %p156 = scmp.eq.s32.totalorder %s25, 0
      %p157 = por %p155, %p156
      %s159 = sadd.s32 %s158, 1
      %p162 = scmp.eq.s32.totalorder %s19, 1
      %p163 = scmp.ne.s32.totalorder %s158, %s160
      %p164 = scmp.eq.s32.totalorder %s19, 0
      %p165 = por %p163, %p164
      %p166 = scmp.ne.s32.totalorder %s158, %s160
      %p167 = scmp.eq.s32.totalorder %s24, 1
      %p168 = por %p166, %p167
      %p169 = scmp.ne.s32.totalorder %s160, %s161
      %p170 = scmp.eq.s32.totalorder %s24, 0
      %p171 = por %p169, %p170
      %p172 = scmp.ne.s32.totalorder %s160, %s161
      %p173 = scmp.eq.s32.totalorder %s25, 1
      %p174 = por %p172, %p173
      %p176 = scmp.ne.s32.totalorder %s161, %s175
      %p177 = scmp.eq.s32.totalorder %s25, 0
      %p178 = por %p176, %p177
      %s180 = sadd.s32 %s179, 1
      %p183 = scmp.eq.s32.totalorder %s19, 1
      %p184 = scmp.ne.s32.totalorder %s179, %s181
      %p185 = scmp.eq.s32.totalorder %s19, 0
      %p186 = por %p184, %p185
      %p187 = scmp.ne.s32.totalorder %s179, %s181
      %p188 = scmp.eq.s32.totalorder %s24, 1
      %p189 = por %p187, %p188
      %p190 = scmp.ne.s32.totalorder %s181, %s182
      %p191 = scmp.eq.s32.totalorder %s24, 0
      %p192 = por %p190, %p191
      %p193 = scmp.ne.s32.totalorder %s181, %s182
      %p194 = scmp.eq.s32.totalorder %s25, 1
      %p195 = por %p193, %p194
      %p197 = scmp.ne.s32.totalorder %s182, %s196
      %p198 = scmp.eq.s32.totalorder %s25, 0
      %p199 = por %p197, %p198
      %s200 = ssub.s32 %s19, %s26
      %p201 = scmp.eq.s32.totalorder %s200, 0
      %s203 = sadd.s32 %s202, 1
      %s204 = scalar_select %p201, %s202, %s203
      %p207 = pneg %p201
      %p208 = scmp.eq.s32.totalorder %s19, 1
      %p209 = por %p207, %p208
      %p210 = scmp.ne.s32.totalorder %s202, %s205
      %p211 = scmp.eq.s32.totalorder %s19, 0
      %p212 = por %p210, %p211
      %p213 = scmp.ne.s32.totalorder %s202, %s205
      %p214 = scmp.eq.s32.totalorder %s24, 1
      %p215 = por %p213, %p214
      %p216 = scmp.ne.s32.totalorder %s205, %s206
      %p217 = scmp.eq.s32.totalorder %s24, 0
      %p218 = por %p216, %p217
      %p219 = scmp.ne.s32.totalorder %s205, %s206
      %p220 = scmp.eq.s32.totalorder %s25, 1
      %p221 = por %p219, %p220
      %p223 = scmp.ne.s32.totalorder %s206, %s222
      %p224 = scmp.eq.s32.totalorder %s25, 0
      %p225 = por %p223, %p224
      %p226 = scmp.le.s32.totalorder 1, %s19
      %p227 = scmp.lt.s32.totalorder %s19, 3
      %p228 = pnand %p226, %p227
      %p229 = pneg %p228
      // Predicated region
      $region9: #{tpu_custom_call.1} parent=5 // pred_check
        _
      $region10: #{tpu_custom_call.1} parent=5 // pred_check_branch
        %231 = sbr.rel (%p228) target = $region12
      $region11: #{tpu_custom_call.1} parent=5 // pred_region
        %s232 = ssub.s32 %s19, 1
        // Predicated region
        $region13: #{tpu_custom_call.1} parent=11 // pred_check
          %p233 = pneg %p66
        $region14: #{tpu_custom_call.1} parent=11 // pred_check_branch
          %235 = sbr.rel (%p233) target = $region16
        $region15: #{tpu_custom_call.1} parent=11 // pred_region
          _
        $region16: #{tpu_custom_call.1} parent=11 // pred_fallthru
          _
        // Predicated region
        $region17: #{tpu_custom_call.1} parent=11 // pred_check
          %p236 = pneg %p87
        $region18: #{tpu_custom_call.1} parent=11 // pred_check_branch
          %238 = sbr.rel (%p236) target = $region20
        $region19: #{tpu_custom_call.1} parent=11 // pred_region
          _
        $region20: #{tpu_custom_call.1} parent=11 // pred_fallthru
          _
        // Predicated region
        $region21: #{tpu_custom_call.1} parent=11 // pred_check
          %p239 = pneg %p108
        $region22: #{tpu_custom_call.1} parent=11 // pred_check_branch
          %241 = sbr.rel (%p239) target = $region24
        $region23: #{tpu_custom_call.1} parent=11 // pred_region
          %243 = vsyncadd [#allocation3], 0
          %s244 = sshll.u32 %s3, 4
          %s245 = int_to_ptr.hbm [resolvable:$true] %s244
          %s246 = sshll.u32 [#allocation2], 4
          %s247 = int_to_ptr.vmem [resolvable:$true] %s246
          %252 = dma.hbm_to_vmem [thread:$0]  %s245, 512, %s247, [#allocation3], 256, 256, 16
        $region24: #{tpu_custom_call.1} parent=11 // pred_fallthru
          _
        // Predicated region
        $region25: #{tpu_custom_call.1} parent=11 // pred_check
          %p253 = pneg %p129
        $region26: #{tpu_custom_call.1} parent=11 // pred_check_branch
          %255 = sbr.rel (%p253) target = $region28
        $region27: #{tpu_custom_call.1} parent=11 // pred_region
          _
        $region28: #{tpu_custom_call.1} parent=11 // pred_fallthru
          _
        // Predicated region
        $region29: #{tpu_custom_call.1} parent=11 // pred_check
          %p256 = pneg %p150
        $region30: #{tpu_custom_call.1} parent=11 // pred_check_branch
          %258 = sbr.rel (%p256) target = $region32
        $region31: #{tpu_custom_call.1} parent=11 // pred_region
          _
        $region32: #{tpu_custom_call.1} parent=11 // pred_fallthru
          _
        // Predicated region
        $region33: #{tpu_custom_call.1} parent=11 // pred_check
          %p259 = pneg %p171
        $region34: #{tpu_custom_call.1} parent=11 // pred_check_branch
          %261 = sbr.rel (%p259) target = $region36
        $region35: #{tpu_custom_call.1} parent=11 // pred_region
          _
        $region36: #{tpu_custom_call.1} parent=11 // pred_fallthru
          _
        // Predicated region
        $region37: #{tpu_custom_call.1} parent=11 // pred_check
          %p262 = pneg %p192
        $region38: #{tpu_custom_call.1} parent=11 // pred_check_branch
          %264 = sbr.rel (%p262) target = $region40
        $region39: #{tpu_custom_call.1} parent=11 // pred_region
          %266 = vsyncadd [#allocation6], 0
          %s267 = sshll.u32 %s7, 4
          %s268 = int_to_ptr.hbm [resolvable:$true] %s267
          %s269 = sshll.u32 [#allocation5], 4
          %s270 = int_to_ptr.vmem [resolvable:$true] %s269
          %275 = dma.hbm_to_vmem [thread:$0]  %s268, 256, %s270, [#allocation6], 128, 128, 8
        $region40: #{tpu_custom_call.1} parent=11 // pred_fallthru
          _
      $region12: #{tpu_custom_call.1} parent=5 // pred_fallthru
        _
      %p276 = scmp.lt.s32.totalorder %s19, 2
      // Predicated region
      $region41: #{tpu_custom_call.1} parent=5 // pred_check
        %p277 = pneg %p276
      $region42: #{tpu_custom_call.1} parent=5 // pred_check_branch
        %279 = sbr.rel (%p277) target = $region44
      $region43: #{tpu_custom_call.1} parent=5 // pred_region
        // Predicated region
        $region45: #{tpu_custom_call.1} parent=43 // pred_check
          %p280 = pneg %p39
        $region46: #{tpu_custom_call.1} parent=43 // pred_check_branch
          %282 = sbr.rel (%p280) target = $region48
        $region47: #{tpu_custom_call.1} parent=43 // pred_region
          %p283 = scmp.lt.s32.totalorder %s19, 1
          %s284 = scalar_select %p283, %s19, 1
          %s285 = smul.addr %s284, 4
          %s286 = smul.addr %s285, 8
          %s287 = scalar_lea.vmem %s0, %s286
        $region48: #{tpu_custom_call.1} parent=43 // pred_fallthru
          _
      $region44: #{tpu_custom_call.1} parent=5 // pred_fallthru
        _
      %p288 = scmp.le.s32.totalorder 1, %s19
      %p289 = scmp.lt.s32.totalorder %s19, 3
      %p290 = pnand %p288, %p289
      %p291 = pneg %p290
      // Predicated region
      $region49: #{tpu_custom_call.1} parent=5 // pred_check
        _
      $region50: #{tpu_custom_call.1} parent=5 // pred_check_branch
        %293 = sbr.rel (%p290) target = $region52
      $region51: #{tpu_custom_call.1} parent=5 // pred_region
        %s294 = ssub.s32 %s19, 1
        // Predicated region
        $region53: #{tpu_custom_call.1} parent=51 // pred_check
          %p295 = pneg %p108
        $region54: #{tpu_custom_call.1} parent=51 // pred_check_branch
          %297 = sbr.rel (%p295) target = $region56
        $region55: #{tpu_custom_call.1} parent=51 // pred_region
          %299 = dma.done [#allocation3], 512
        $region56: #{tpu_custom_call.1} parent=51 // pred_fallthru
          _
        // Predicated region
        $region57: #{tpu_custom_call.1} parent=51 // pred_check
          %p300 = pneg %p192
        $region58: #{tpu_custom_call.1} parent=51 // pred_check_branch
          %302 = sbr.rel (%p300) target = $region60
        $region59: #{tpu_custom_call.1} parent=51 // pred_region
          %304 = dma.done [#allocation6], 256
        $region60: #{tpu_custom_call.1} parent=51 // pred_fallthru
          _
        %p305 = scmp.lt.s32.totalorder %s24, 1
        %s306 = scalar_select %p305, %s24, 1
        %s307 = smul.addr %s306, 4
        %s308 = smul.addr %s307, 8
        %s309 = scalar_lea.vmem %s0, %s308
        %p310 = pneg %p45
        %p311 = pneg %p42
        %p312 = pneg %p66
        %p313 = pneg %p63
        %p314 = pneg %p87
        %p315 = pneg %p84
        %p316 = pneg %p108
        %p317 = pneg %p105
        %p318 = pneg %p129
        %p319 = pneg %p126
        %p320 = pneg %p150
        %p321 = pneg %p147
        %p322 = pneg %p171
        %p323 = pneg %p168
        %p324 = pneg %p192
        %p325 = pneg %p189
        %p326 = pneg %p218
        %p327 = pneg %p215
        %s328 = sand.u32 %s205, 1
        %s329 = scalar_lea.sflag [#allocation4], %s328
        %s330 = sand.u32 %s205, 1
        %s331 = smul.addr %s330, 32
        %s332 = scalar_lea.vmem [#allocation7], %s331
        %p333 = scmp.lt.s32.totalorder %s24, 1
        %s334 = scalar_select %p333, %s24, 1
        %s335 = smul.addr %s334, 4
        %s336 = smul.addr %s335, 8
        %s337 = scalar_lea.vmem %s0, %s336
        %v338 = vld [vmem:[%s1] sm:$0xff]
        %v339 = vld [vmem:[%s1 + $0x8] sm:$0x1]
        %v340 = vld [vmem:[%s2] sm:$0xff]
        %v341 = vld [vmem:[%s2 + $0x8] sm:$0x1]
        %v342 = vld [vmem:[#allocation2] sm:$0xff]
        %v343 = vld [vmem:[#allocation2 + $0x8] sm:$0xff]
        %v344 = vld [vmem:[#allocation2 + $0x10] sm:$0x1]
        %v345 = vld [vmem:[#allocation2 + $0x18] sm:$0x1]
        %v346 = vld [vmem:[%s4] sm:$0xff]
        %v347 = vld [vmem:[%s4 + $0x8] sm:$0xff]
        %v348 = vld [vmem:[%s5] sm:$0x1]
        %v349 = vld [vmem:[#allocation5] sm:$0xff]
        %v350 = vld [vmem:[#allocation5 + $0x8] sm:$0xff]
        %v351 = vld [vmem:[%s6] sm:$0xff]
        %v352 = vld [vmem:[%s6 + $0x8] sm:$0xff]
        %s353 = scalar_lea.vmem %s6, 16
        %v354 = vld [vmem:[%s353] sm:$0xff]
        %v355 = vld [vmem:[%s353 + $0x8] sm:$0xff]
        %s356 = scalar_lea.vmem %s6, 32
        %v357 = vld [vmem:[%s356] sm:$0xff]
        %v358 = vld [vmem:[%s356 + $0x8] sm:$0xff]
        %v359 = vld [vmem:[%s337] sm:$0xff]
        %v360 = vld [vmem:[%s337 + $0x8] sm:$0xff]
        %v361 = vld [vmem:[%s337 + $0x10] sm:$0xff]
        %v362 = vld [vmem:[%s337 + $0x18] sm:$0xff]
        %364 = vset.pattern.permute.xlu0 0
        %365 = vperm.xlu0 %364, %v340
        %v366 = vpop.permute.xlu0 %365
        %369 = vset.pattern.permute.xlu0 0
        %370 = vperm.xlu0 %369, %v341
        %v371 = vpop.permute.xlu0 %370
        %vm373 = vcmask 130048
        %v375 = vsel %vm373, %v338, 0
        %v378 = vsel %vm373, %v339, 0
        %380 = vmatpush.msra.mxu0 0.0
        %381 = vmatpush.msra.mxu0 0.0
        %382 = vmatpush.msra.mxu0 0.0
        %383 = vmatpush.msra.mxu0 0.0
        %384 = vmatpush.msra.mxu0 0.0
        %385 = vmatpush.msra.mxu0 0.0
        %386 = vmatpush.msra.mxu0 0.0
        %387 = vmatpush.msra.mxu0 0.0
        %388 = vmatpush.msra.mxu0 0.0
        %389 = vmatpush.msra.mxu0 0.0
        %390 = vmatpush.msra.mxu0 0.0
        %391 = vmatpush.msra.mxu0 0.0
        %392 = vmatpush.msra.mxu0 0.0
        %393 = vmatpush.msra.mxu0 0.0
        %394 = vmatpush.msra.mxu0 %v361
        %395 = vmatpush.msra.mxu0 %v359
        %396 = vmatmul.f32.gmra.mxu0 %v375
        %v397 = vpop.f32.mrf.mxu0
        %v398 = vadd.f32 %v366, %v397
        %399 = vmatmul.f32.gmra.mxu0 %v378
        %v400 = vpop.f32.mrf.mxu0
        %v401 = vadd.f32 %v371, %v400
        %402 = vdwg.mxu0
        %403 = vmatpush.msra.mxu0 0.0
        %404 = vmatpush.msra.mxu0 0.0
        %405 = vmatpush.msra.mxu0 0.0
        %406 = vmatpush.msra.mxu0 0.0
        %407 = vmatpush.msra.mxu0 0.0
        %408 = vmatpush.msra.mxu0 0.0
        %409 = vmatpush.msra.mxu0 0.0
        %410 = vmatpush.msra.mxu0 0.0
        %411 = vmatpush.msra.mxu0 0.0
        %412 = vmatpush.msra.mxu0 0.0
        %413 = vmatpush.msra.mxu0 0.0
        %414 = vmatpush.msra.mxu0 0.0
        %415 = vmatpush.msra.mxu0 0.0
        %416 = vmatpush.msra.mxu0 0.0
        %417 = vmatpush.msra.mxu0 %v362
        %418 = vmatpush.msra.mxu0 %v360
        %419 = vmatmul.f32.gmra.mxu0 %v375
        %v420 = vpop.f32.mrf.mxu0
        %v421 = vadd.f32 %v366, %v420
        %422 = vmatmul.f32.gmra.mxu0 %v378
        %v423 = vpop.f32.mrf.mxu0
        %v424 = vadd.f32 %v371, %v423
        %425 = vdwg.mxu0
        %v426 = vxor.u32 %v398, 2147483648
        %v427 = vxor.u32 %v421, 2147483648
        %v428 = vxor.u32 %v401, 2147483648
        %v429 = vxor.u32 %v424, 2147483648
        %v430 = vmul.f32 %v426, 1.442695
        %v431 = vpow.pop %v430
        %v432 = vmul.f32 %v427, 1.442695
        %v433 = vpow.pop %v432
        %v434 = vmul.f32 %v428, 1.442695
        %v435 = vpow.pop %v434
        %v436 = vmul.f32 %v429, 1.442695
        %v437 = vpow.pop %v436
        %v438 = vadd.f32 %v431, 1.0
        %v439 = vadd.f32 %v433, 1.0
        %v440 = vadd.f32 %v435, 1.0
        %v441 = vadd.f32 %v437, 1.0
        %v442 = vrcp.pop %v438
        %v443 = vmul.f32 %v438, %v442
        %v444 = vsub.f32 1.0, %v443
        %v445 = vmul.f32 %v442, %v444
        %v446 = vadd.f32 %v442, %v445
        %vm447 = vweird.f32 %v438
        %vm448 = vweird.f32 %v442
        %vm449 = vmor %vm447, %vm448
        %v450 = vsel %vm449, %v442, %v446
        %v451 = vand.u32 2147483647, %v438
        %vm452 = vcmp.eq.f32.partialorder %v451, 8.507059e+37
        %v453 = vand.u32 %v438, 2147483648
        %v454 = vor.u32 1.1754944e-38, %v453
        %v455 = vsel %vm452, %v454, %v450
        %v456 = vmul.f32 1.0, %v455
        %v457 = vrcp.pop %v439
        %v458 = vmul.f32 %v439, %v457
        %v459 = vsub.f32 1.0, %v458
        %v460 = vmul.f32 %v457, %v459
        %v461 = vadd.f32 %v457, %v460
        %vm462 = vweird.f32 %v439
        %vm463 = vweird.f32 %v457
        %vm464 = vmor %vm462, %vm463
        %v465 = vsel %vm464, %v457, %v461
        %v466 = vand.u32 2147483647, %v439
        %vm467 = vcmp.eq.f32.partialorder %v466, 8.507059e+37
        %v468 = vand.u32 %v439, 2147483648
        %v469 = vor.u32 1.1754944e-38, %v468
        %v470 = vsel %vm467, %v469, %v465
        %v471 = vmul.f32 1.0, %v470
        %v472 = vrcp.pop %v440
        %v473 = vmul.f32 %v440, %v472
        %v474 = vsub.f32 1.0, %v473
        %v475 = vmul.f32 %v472, %v474
        %v476 = vadd.f32 %v472, %v475
        %vm477 = vweird.f32 %v440
        %vm478 = vweird.f32 %v472
        %vm479 = vmor %vm477, %vm478
        %v480 = vsel %vm479, %v472, %v476
        %v481 = vand.u32 2147483647, %v440
        %vm482 = vcmp.eq.f32.partialorder %v481, 8.507059e+37
        %v483 = vand.u32 %v440, 2147483648
        %v484 = vor.u32 1.1754944e-38, %v483
        %v485 = vsel %vm482, %v484, %v480
        %v486 = vmul.f32 1.0, %v485
        %v487 = vrcp.pop %v441
        %v488 = vmul.f32 %v441, %v487
        %v489 = vsub.f32 1.0, %v488
        %v490 = vmul.f32 %v487, %v489
        %v491 = vadd.f32 %v487, %v490
        %vm492 = vweird.f32 %v441
        %vm493 = vweird.f32 %v487
        %vm494 = vmor %vm492, %vm493
        %v495 = vsel %vm494, %v487, %v491
        %v496 = vand.u32 2147483647, %v441
        %vm497 = vcmp.eq.f32.partialorder %v496, 8.507059e+37
        %v498 = vand.u32 %v441, 2147483648
        %v499 = vor.u32 1.1754944e-38, %v498
        %v500 = vsel %vm497, %v499, %v495
        %v501 = vmul.f32 1.0, %v500
        %v502 = vmul.f32 %v456, %v342
        %v503 = vmul.f32 %v471, %v343
        %v504 = vmul.f32 %v486, %v344
        %v505 = vmul.f32 %v501, %v345
        %v506 = vadd.f32 %v359, %v360
        %507 = vadd.xlane.f32.xlu0 %v506
        %v508 = vpop.xlane.xlu0 %507
        %v509 = vadd.f32 %v361, %v362
        %510 = vadd.xlane.f32.xlu0 %v509
        %v511 = vpop.xlane.xlu0 %510
        %v512 = vrcp.pop 256.0
        %v513 = vmul.f32 256.0, %v512
        %v514 = vsub.f32 1.0, %v513
        %v515 = vmul.f32 %v512, %v514
        %v516 = vadd.f32 %v512, %v515
        %vm517 = vweird.f32 %v512
        %v518 = vsel %vm517, %v512, %v516
        %v519 = vmul.f32 %v508, %v518
        %v520 = vmul.f32 %v511, %v518
        %v521 = vmul.f32 %v346, %v519
        %v522 = vmul.f32 %v347, %v520
        %vm523 = vcmask 23552
        %v524 = vsel %vm523, %v521, 0.0
        %v525 = vsel %vm523, %v522, 0.0
        %v526 = vadd.f32 %v524, %v525
        %v527 = vrot.slane %v526, 4
        %v528 = vadd.f32 %v526, %v527
        %v529 = vrot.slane %v528, 2
        %v530 = vadd.f32 %v528, %v529
        %v531 = vrot.slane %v530, 1
        %v532 = vadd.f32 %v530, %v531
        %v533 = vadd.f32 %v532, %v348
        %v534 = vmax.f32 %v533, 0.0
        %s536 = vtos %v534
        %v537 = vstv %s536
        %v539 = vmul.f32 %v537, %v351
        %v540 = vmul.f32 %v537, %v352
        %v541 = vadd.f32 %v349, %v539
        %v542 = vadd.f32 %v350, %v540
        %543 = vrot.lane.b32.xlu0 %v534, 127
        %v544 = vpop.permute.xlu0 %543
        %s545 = vtos %v544
        %v546 = vstv %s545
        %v548 = vmul.f32 %v546, %v354
        %v549 = vmul.f32 %v546, %v355
        %v550 = vadd.f32 %v541, %v548
        %v551 = vadd.f32 %v542, %v549
        %552 = vrot.lane.b32.xlu0 %v534, 126
        %v553 = vpop.permute.xlu0 %552
        %s554 = vtos %v553
        %v555 = vstv %s554
        %v557 = vmul.f32 %v555, %v357
        %v558 = vmul.f32 %v555, %v358
        %v559 = vadd.f32 %v550, %v557
        %v560 = vadd.f32 %v551, %v558
        %v561 = vxor.u32 %v559, 2147483648
        %v562 = vxor.u32 %v560, 2147483648
        %v563 = vmul.f32 %v561, 1.442695
        %v564 = vpow.pop %v563
        %v565 = vmul.f32 %v562, 1.442695
        %v566 = vpow.pop %v565
        %v567 = vadd.f32 %v564, 1.0
        %v568 = vadd.f32 %v566, 1.0
        %v569 = vrcp.pop %v567
        %v570 = vmul.f32 %v567, %v569
        %v571 = vsub.f32 1.0, %v570
        %v572 = vmul.f32 %v569, %v571
        %v573 = vadd.f32 %v569, %v572
        %vm574 = vweird.f32 %v567
        %vm575 = vweird.f32 %v569
        %vm576 = vmor %vm574, %vm575
        %v577 = vsel %vm576, %v569, %v573
        %v578 = vand.u32 2147483647, %v567
        %vm579 = vcmp.eq.f32.partialorder %v578, 8.507059e+37
        %v580 = vand.u32 %v567, 2147483648
        %v581 = vor.u32 1.1754944e-38, %v580
        %v582 = vsel %vm579, %v581, %v577
        %v583 = vmul.f32 1.0, %v582
        %v584 = vrcp.pop %v568
        %v585 = vmul.f32 %v568, %v584
        %v586 = vsub.f32 1.0, %v585
        %v587 = vmul.f32 %v584, %v586
        %v588 = vadd.f32 %v584, %v587
        %vm589 = vweird.f32 %v568
        %vm590 = vweird.f32 %v584
        %vm591 = vmor %vm589, %vm590
        %v592 = vsel %vm591, %v584, %v588
        %v593 = vand.u32 2147483647, %v568
        %vm594 = vcmp.eq.f32.partialorder %v593, 8.507059e+37
        %v595 = vand.u32 %v568, 2147483648
        %v596 = vor.u32 1.1754944e-38, %v595
        %v597 = vsel %vm594, %v596, %v592
        %v598 = vmul.f32 1.0, %v597
        %599 = vrot.lane.b32.xlu0 %v359, 17
        %v600 = vpop.permute.xlu0 %599
        %601 = vrot.lane.b32.xlu0 %v361, 17
        %v602 = vpop.permute.xlu0 %601
        %603 = vrot.lane.b32.xlu0 %v360, 17
        %v604 = vpop.permute.xlu0 %603
        %605 = vrot.lane.b32.xlu0 %v362, 17
        %v606 = vpop.permute.xlu0 %605
        %v607 = vlaneseq
        %v608 = vand.u32 %v607, 127
        %vm609 = vcmp.lt.s32.totalorder %v608, 17
        %v610 = vsel %vm609, %v600, %v604
        %v611 = vsel %vm609, %v602, %v606
        %v612 = vsel %vm609, %v604, %v600
        %v613 = vsel %vm609, %v606, %v602
        %v614 = vperm.slane %v502, 0
        %v615 = vperm.slane %v503, 0
        %617 = vset.pattern.permute.xlu0 0
        %618 = vperm.xlu0 %617, %v583
        %v619 = vpop.permute.xlu0 %618
        %622 = vset.pattern.permute.xlu0 0
        %623 = vperm.xlu0 %622, %v598
        %v624 = vpop.permute.xlu0 %623
        %v626 = vmul.f32 %v614, %v619
        %v627 = vmul.f32 %v615, %v619
        %v628 = vmul.f32 %v614, %v624
        %v629 = vmul.f32 %v615, %v624
        %v630 = vmul.f32 %v612, %v626
        %v631 = vmul.f32 %v610, %v627
        %v632 = vmul.f32 %v613, %v628
        %v633 = vmul.f32 %v611, %v629
        %v634 = vadd.f32 %v630, 0.0
        %v635 = vadd.f32 %v631, 0.0
        %v636 = vadd.f32 %v632, 0.0
        %v637 = vadd.f32 %v633, 0.0
        %638 = vrot.lane.b32.xlu0 %v359, 16
        %v639 = vpop.permute.xlu0 %638
        %640 = vrot.lane.b32.xlu0 %v361, 16
        %v641 = vpop.permute.xlu0 %640
        %642 = vrot.lane.b32.xlu0 %v360, 16
        %v643 = vpop.permute.xlu0 %642
        %644 = vrot.lane.b32.xlu0 %v362, 16
        %v645 = vpop.permute.xlu0 %644
        %vm646 = vcmp.lt.s32.totalorder %v608, 16
        %v647 = vsel %vm646, %v639, %v643
        %v648 = vsel %vm646, %v641, %v645
        %v649 = vsel %vm646, %v643, %v639
        %v650 = vsel %vm646, %v645, %v641
        %v651 = vperm.slane %v502, 1
        %v652 = vperm.slane %v503, 1
        %653 = vset.pattern.permute.xlu0 1
        %654 = vperm.xlu0 %653, %v583
        %v655 = vpop.permute.xlu0 %654
        %657 = vset.pattern.permute.xlu0 1
        %658 = vperm.xlu0 %657, %v598
        %v659 = vpop.permute.xlu0 %658
        %v661 = vmul.f32 %v651, %v655
        %v662 = vmul.f32 %v652, %v655
        %v663 = vmul.f32 %v651, %v659
        %v664 = vmul.f32 %v652, %v659
        %v665 = vmul.f32 %v649, %v661
        %v666 = vmul.f32 %v647, %v662
        %v667 = vmul.f32 %v650, %v663
        %v668 = vmul.f32 %v648, %v664
        %v669 = vadd.f32 %v634, %v665
        %v670 = vadd.f32 %v635, %v666
        %v671 = vadd.f32 %v636, %v667
        %v672 = vadd.f32 %v637, %v668
        %673 = vrot.lane.b32.xlu0 %v359, 15
        %v674 = vpop.permute.xlu0 %673
        %675 = vrot.lane.b32.xlu0 %v361, 15
        %v676 = vpop.permute.xlu0 %675
        %677 = vrot.lane.b32.xlu0 %v360, 15
        %v678 = vpop.permute.xlu0 %677
        %679 = vrot.lane.b32.xlu0 %v362, 15
        %v680 = vpop.permute.xlu0 %679
        %vm681 = vcmp.lt.s32.totalorder %v608, 15
        %v682 = vsel %vm681, %v674, %v678
        %v683 = vsel %vm681, %v676, %v680
        %v684 = vsel %vm681, %v678, %v674
        %v685 = vsel %vm681, %v680, %v676
        %v686 = vperm.slane %v502, 2
        %v687 = vperm.slane %v503, 2
        %688 = vset.pattern.permute.xlu0 2
        %689 = vperm.xlu0 %688, %v583
        %v690 = vpop.permute.xlu0 %689
        %692 = vset.pattern.permute.xlu0 2
        %693 = vperm.xlu0 %692, %v598
        %v694 = vpop.permute.xlu0 %693
        %v696 = vmul.f32 %v686, %v690
        %v697 = vmul.f32 %v687, %v690
        %v698 = vmul.f32 %v686, %v694
        %v699 = vmul.f32 %v687, %v694
        %v700 = vmul.f32 %v684, %v696
        %v701 = vmul.f32 %v682, %v697
        %v702 = vmul.f32 %v685, %v698
        %v703 = vmul.f32 %v683, %v699
        %v704 = vadd.f32 %v669, %v700
        %v705 = vadd.f32 %v670, %v701
        %v706 = vadd.f32 %v671, %v702
        %v707 = vadd.f32 %v672, %v703
        %708 = vrot.lane.b32.xlu0 %v359, 1
        %v709 = vpop.permute.xlu0 %708
        %710 = vrot.lane.b32.xlu0 %v361, 1
        %v711 = vpop.permute.xlu0 %710
        %712 = vrot.lane.b32.xlu0 %v360, 1
        %v713 = vpop.permute.xlu0 %712
        %714 = vrot.lane.b32.xlu0 %v362, 1
        %v715 = vpop.permute.xlu0 %714
        %vm716 = vcmp.lt.s32.totalorder %v608, 1
        %v717 = vsel %vm716, %v709, %v713
        %v718 = vsel %vm716, %v711, %v715
        %v719 = vsel %vm716, %v713, %v709
        %v720 = vsel %vm716, %v715, %v711
        %v721 = vperm.slane %v502, 3
        %v722 = vperm.slane %v503, 3
        %723 = vset.pattern.permute.xlu0 3
        %724 = vperm.xlu0 %723, %v583
        %v725 = vpop.permute.xlu0 %724
        %727 = vset.pattern.permute.xlu0 3
        %728 = vperm.xlu0 %727, %v598
        %v729 = vpop.permute.xlu0 %728
        %v731 = vmul.f32 %v721, %v725
        %v732 = vmul.f32 %v722, %v725
        %v733 = vmul.f32 %v721, %v729
        %v734 = vmul.f32 %v722, %v729
        %v735 = vmul.f32 %v719, %v731
        %v736 = vmul.f32 %v717, %v732
        %v737 = vmul.f32 %v720, %v733
        %v738 = vmul.f32 %v718, %v734
        %v739 = vadd.f32 %v704, %v735
        %v740 = vadd.f32 %v705, %v736
        %v741 = vadd.f32 %v706, %v737
        %v742 = vadd.f32 %v707, %v738
        %v743 = vperm.slane %v502, 4
        %v744 = vperm.slane %v503, 4
        %745 = vset.pattern.permute.xlu0 4
        %746 = vperm.xlu0 %745, %v583
        %v747 = vpop.permute.xlu0 %746
        %749 = vset.pattern.permute.xlu0 4
        %750 = vperm.xlu0 %749, %v598
        %v751 = vpop.permute.xlu0 %750
        %v753 = vmul.f32 %v743, %v747
        %v754 = vmul.f32 %v744, %v747
        %v755 = vmul.f32 %v743, %v751
        %v756 = vmul.f32 %v744, %v751
        %v757 = vmul.f32 %v359, %v753
        %v758 = vmul.f32 %v360, %v754
        %v759 = vmul.f32 %v361, %v755
        %v760 = vmul.f32 %v362, %v756
        %v761 = vadd.f32 %v739, %v757
        %v762 = vadd.f32 %v740, %v758
        %v763 = vadd.f32 %v741, %v759
        %v764 = vadd.f32 %v742, %v760
        %765 = vrot.lane.b32.xlu0 %v359, 127
        %v766 = vpop.permute.xlu0 %765
        %767 = vrot.lane.b32.xlu0 %v361, 127
        %v768 = vpop.permute.xlu0 %767
        %769 = vrot.lane.b32.xlu0 %v360, 127
        %v770 = vpop.permute.xlu0 %769
        %771 = vrot.lane.b32.xlu0 %v362, 127
        %v772 = vpop.permute.xlu0 %771
        %vm773 = vcmp.lt.s32.totalorder %v608, 127
        %v774 = vsel %vm773, %v766, %v770
        %v775 = vsel %vm773, %v768, %v772
        %v776 = vsel %vm773, %v770, %v766
        %v777 = vsel %vm773, %v772, %v768
        %v778 = vperm.slane %v502, 5
        %v779 = vperm.slane %v503, 5
        %780 = vset.pattern.permute.xlu0 5
        %781 = vperm.xlu0 %780, %v583
        %v782 = vpop.permute.xlu0 %781
        %784 = vset.pattern.permute.xlu0 5
        %785 = vperm.xlu0 %784, %v598
        %v786 = vpop.permute.xlu0 %785
        %v788 = vmul.f32 %v778, %v782
        %v789 = vmul.f32 %v779, %v782
        %v790 = vmul.f32 %v778, %v786
        %v791 = vmul.f32 %v779, %v786
        %v792 = vmul.f32 %v774, %v788
        %v793 = vmul.f32 %v776, %v789
        %v794 = vmul.f32 %v775, %v790
        %v795 = vmul.f32 %v777, %v791
        %v796 = vadd.f32 %v761, %v792
        %v797 = vadd.f32 %v762, %v793
        %v798 = vadd.f32 %v763, %v794
        %v799 = vadd.f32 %v764, %v795
        %800 = vrot.lane.b32.xlu0 %v359, 113
        %v801 = vpop.permute.xlu0 %800
        %802 = vrot.lane.b32.xlu0 %v361, 113
        %v803 = vpop.permute.xlu0 %802
        %804 = vrot.lane.b32.xlu0 %v360, 113
        %v805 = vpop.permute.xlu0 %804
        %806 = vrot.lane.b32.xlu0 %v362, 113
        %v807 = vpop.permute.xlu0 %806
        %vm808 = vcmp.lt.s32.totalorder %v608, 113
        %v809 = vsel %vm808, %v801, %v805
        %v810 = vsel %vm808, %v803, %v807
        %v811 = vsel %vm808, %v805, %v801
        %v812 = vsel %vm808, %v807, %v803
        %v813 = vperm.slane %v502, 6
        %v814 = vperm.slane %v503, 6
        %815 = vset.pattern.permute.xlu0 6
        %816 = vperm.xlu0 %815, %v583
        %v817 = vpop.permute.xlu0 %816
        %819 = vset.pattern.permute.xlu0 6
        %820 = vperm.xlu0 %819, %v598
        %v821 = vpop.permute.xlu0 %820
        %v823 = vmul.f32 %v813, %v817
        %v824 = vmul.f32 %v814, %v817
        %v825 = vmul.f32 %v813, %v821
        %v826 = vmul.f32 %v814, %v821
        %v827 = vmul.f32 %v809, %v823
        %v828 = vmul.f32 %v811, %v824
        %v829 = vmul.f32 %v810, %v825
        %v830 = vmul.f32 %v812, %v826
        %v831 = vadd.f32 %v796, %v827
        %v832 = vadd.f32 %v797, %v828
        %v833 = vadd.f32 %v798, %v829
        %v834 = vadd.f32 %v799, %v830
        %835 = vrot.lane.b32.xlu0 %v359, 112
        %v836 = vpop.permute.xlu0 %835
        %837 = vrot.lane.b32.xlu0 %v361, 112
        %v838 = vpop.permute.xlu0 %837
        %839 = vrot.lane.b32.xlu0 %v360, 112
        %v840 = vpop.permute.xlu0 %839
        %841 = vrot.lane.b32.xlu0 %v362, 112
        %v842 = vpop.permute.xlu0 %841
        %vm843 = vcmp.lt.s32.totalorder %v608, 112
        %v844 = vsel %vm843, %v836, %v840
        %v845 = vsel %vm843, %v838, %v842
        %v846 = vsel %vm843, %v840, %v836
        %v847 = vsel %vm843, %v842, %v838
        %v848 = vperm.slane %v502, 7
        %v849 = vperm.slane %v503, 7
        %850 = vset.pattern.permute.xlu0 7
        %851 = vperm.xlu0 %850, %v583
        %v852 = vpop.permute.xlu0 %851
        %854 = vset.pattern.permute.xlu0 7
        %855 = vperm.xlu0 %854, %v598
        %v856 = vpop.permute.xlu0 %855
        %v858 = vmul.f32 %v848, %v852
        %v859 = vmul.f32 %v849, %v852
        %v860 = vmul.f32 %v848, %v856
        %v861 = vmul.f32 %v849, %v856
        %v862 = vmul.f32 %v844, %v858
        %v863 = vmul.f32 %v846, %v859
        %v864 = vmul.f32 %v845, %v860
        %v865 = vmul.f32 %v847, %v861
        %v866 = vadd.f32 %v831, %v862
        %v867 = vadd.f32 %v832, %v863
        %v868 = vadd.f32 %v833, %v864
        %v869 = vadd.f32 %v834, %v865
        %870 = vrot.lane.b32.xlu0 %v359, 111
        %v871 = vpop.permute.xlu0 %870
        %872 = vrot.lane.b32.xlu0 %v361, 111
        %v873 = vpop.permute.xlu0 %872
        %874 = vrot.lane.b32.xlu0 %v360, 111
        %v875 = vpop.permute.xlu0 %874
        %876 = vrot.lane.b32.xlu0 %v362, 111
        %v877 = vpop.permute.xlu0 %876
        %vm878 = vcmp.lt.s32.totalorder %v608, 111
        %v879 = vsel %vm878, %v871, %v875
        %v880 = vsel %vm878, %v873, %v877
        %v881 = vsel %vm878, %v875, %v871
        %v882 = vsel %vm878, %v877, %v873
        %v883 = vperm.slane %v504, 0
        %v884 = vperm.slane %v505, 0
        %885 = vset.pattern.permute.xlu0 8
        %886 = vperm.xlu0 %885, %v583
        %v887 = vpop.permute.xlu0 %886
        %889 = vset.pattern.permute.xlu0 8
        %890 = vperm.xlu0 %889, %v598
        %v891 = vpop.permute.xlu0 %890
        %v893 = vmul.f32 %v883, %v887
        %v894 = vmul.f32 %v884, %v887
        %v895 = vmul.f32 %v883, %v891
        %v896 = vmul.f32 %v884, %v891
        %v897 = vmul.f32 %v879, %v893
        %v898 = vmul.f32 %v881, %v894
        %v899 = vmul.f32 %v880, %v895
        %v900 = vmul.f32 %v882, %v896
        %v901 = vadd.f32 %v866, %v897
        %v902 = vadd.f32 %v867, %v898
        %v903 = vadd.f32 %v868, %v899
        %v904 = vadd.f32 %v869, %v900
        %905 = vst [vmem:[%s332] sm:$0xff] %v901
        %906 = vst [vmem:[%s332 + $0x8] sm:$0xff] %v902
        %907 = vst [vmem:[%s332 + $0x10] sm:$0xff] %v903
        %908 = vst [vmem:[%s332 + $0x18] sm:$0xff] %v904
        %s909 = sand.u32 %s205, 1
        %s910 = scalar_lea.sflag [#allocation4], %s909
        %s911 = sand.u32 %s205, 1
        %s912 = smul.addr %s911, 32
        %s913 = scalar_lea.vmem [#allocation7], %s912
        // Predicated region
        $region61: #{tpu_custom_call.1} parent=51 // pred_check
          %p914 = pneg %p215
        $region62: #{tpu_custom_call.1} parent=51 // pred_check_branch
          %916 = sbr.rel (%p914) target = $region64
        $region63: #{tpu_custom_call.1} parent=51 // pred_region
          %918 = vsyncadd %s910, 0
          %s919 = smul.addr %s24, 4
          %s920 = smul.addr %s919, 8
          %s921 = scalar_lea.hbm %s8, %s920
          %s922 = sshll.u32 %s913, 4
          %s923 = int_to_ptr.vmem [resolvable:$true] %s922
          %s924 = sshll.u32 %s921, 4
          %s925 = int_to_ptr.hbm [resolvable:$true] %s924
          %930 = dma.vmem_to_hbm [thread:$0]  %s923, 512, %s925, %s910, 256, 256, 16
        $region64: #{tpu_custom_call.1} parent=51 // pred_fallthru
          _
      $region52: #{tpu_custom_call.1} parent=5 // pred_fallthru
        _
      %p931 = scmp.le.s32.totalorder 2, %s19
      // Predicated region
      $region65: #{tpu_custom_call.1} parent=5 // pred_check
        %p932 = pneg %p931
      $region66: #{tpu_custom_call.1} parent=5 // pred_check_branch
        %934 = sbr.rel (%p932) target = $region68
      $region67: #{tpu_custom_call.1} parent=5 // pred_region
        %s935 = ssub.s32 %s19, 2
        // Predicated region
        $region69: #{tpu_custom_call.1} parent=67 // pred_check
          %p936 = pneg %p221
        $region70: #{tpu_custom_call.1} parent=67 // pred_check_branch
          %938 = sbr.rel (%p936) target = $region72
        $region71: #{tpu_custom_call.1} parent=67 // pred_region
          %s939 = sand.u32 %s206, 1
          %s940 = scalar_lea.sflag [#allocation4], %s939
          %s941 = sand.u32 %s206, 1
          %s942 = smul.addr %s941, 32
          %s943 = scalar_lea.vmem [#allocation7], %s942
          %945 = dma.done %s940, 512
        $region72: #{tpu_custom_call.1} parent=67 // pred_fallthru
          _
      $region68: #{tpu_custom_call.1} parent=5 // pred_fallthru
        _
    $region6: #{tpu_custom_call.1} parent=1 // loop_footer
      %s23 = sadd.s32 1, %s19
    $region7: #{tpu_custom_call.1} parent=1 // loop_footer_branch
      %18 = sbr.rel target = $region3
    $region8: #{tpu_custom_call.1} parent=1 // loop_exit
      _
    %946 = vsyncpa [#allocation3], 1
    %s947 = scalar_lea.sflag [#allocation3], 1
    %948 = vsyncpa %s947, 1
    %949 = vsyncpa [#allocation6], 1
    %950 = vsyncpa [#allocation4], 1
    %s951 = scalar_lea.sflag [#allocation4], 1
    %952 = vsyncpa %s951, 1

</llo_original>
